<compile_context>
chip_gen: v7x
topology: tpu7x:2x2x1
jax: 0.10.0
libtpu: 0.0.40
codegen_flags: <defaults>
</compile_context>

<pallas_src>
import numpy as np
import jax
import jax.numpy as jnp
from jax.experimental import pallas as pl
from jax.experimental.pallas import tpu as pltpu


def posenc_kernel(x_ref, pe_ref, o_ref):
    # x_ref: (TB, L, D), pe_ref: (L, D) broadcast over the batch tile.
    # Add may promote (e.g. bf16 x + f32 pe); cast explicitly on the store.
    o_ref[...] = (x_ref[...] + pe_ref[...]).astype(o_ref.dtype)


def make_positional_encoding(d_model, max_len=5000, dtype=jnp.float32):
    """Precompute the PE buffer exactly like the PyTorch module's __init__."""
    position = np.arange(max_len, dtype=np.float32)[:, None]
    div_term = np.exp(
        np.arange(0, d_model, 2, dtype=np.float32) * (-np.log(10000.0) / d_model))
    pe = np.zeros((max_len, d_model), dtype=np.float32)
    pe[:, 0::2] = np.sin(position * div_term)
    pe[:, 1::2] = np.cos(position * div_term)
    return jnp.asarray(pe, dtype=dtype)


def _choose_batch_tile(B, L, D, itemsize):
    """Pick TB: ~512-1024 rows/block, <= ~4 MiB/block, >=2 blocks when B > 1."""
    target_rows = 1024
    tb = max(1, min(B, target_rows // max(L, 1)))
    max_block_bytes = 4 * 1024 * 1024
    while tb > 1 and tb * L * D * itemsize > max_block_bytes:
        tb -= 1
    # Give the "parallel" batch axis >=2 blocks so v7x megacore can shard it.
    if tb >= B and B > 1:
        tb = B // 2
    # Keep tiles exact (no masked partial blocks).
    while B % tb != 0:
        tb -= 1
    return tb


def positional_encoding_forward(x, pe_table):
    """out = x + pe[:L]  for x of shape (B, L, D)."""
    B, L, D = x.shape
    max_len = pe_table.shape[0]

    # Do the [:L] slice via the PE BlockSpec (no HBM slice copy) when the
    # (8,128) block constraint allows it; otherwise slice in the wrapper.
    if L == max_len or (L % 8 == 0 and D % 128 == 0):
        pe_in = pe_table
    else:
        pe_in = pe_table[:L, :]

    TB = _choose_batch_tile(B, L, D, jnp.dtype(x.dtype).itemsize)
    grid = (B // TB,)

    return pl.pallas_call(
        posenc_kernel,
        out_shape=jax.ShapeDtypeStruct((B, L, D), x.dtype),
        grid_spec=pltpu.PrefetchScalarGridSpec(
            num_scalar_prefetch=0,
            grid=grid,
            in_specs=[
                # x batch tile: (TB, L, D), lane-dense last dim.
                pl.BlockSpec((TB, L, D), lambda b: (b, 0, 0)),
                # PE tile shared across all batch tiles (constant block index
                # -> DMA'd once, stays resident).  Against the full table this
                # is the rows-[0, L) block.
                pl.BlockSpec((L, D), lambda b: (0, 0)),
            ],
            out_specs=pl.BlockSpec((TB, L, D), lambda b: (b, 0, 0)),
        ),
        # Same-shape elementwise: reuse x's HBM buffer for the output.
        input_output_aliases={0: 0},
        compiler_params=pltpu.CompilerParams(
            dimension_semantics=("parallel",),   # batch tiles independent (v7x megacore)
        ),
    )(x, pe_in)


if __name__ == "__main__":
    # Small shapes consistent with the module: batch=4, seq=16, d_model=128
    # (lane-dense D; forward only requires L <= max_len).
    B, L, D = 4, 16, 128
    MAX_LEN = 64

    key = jax.random.PRNGKey(0)
    x = jax.random.normal(key, (B, L, D), dtype=jnp.float32)
    pe_table = make_positional_encoding(D, max_len=MAX_LEN)

    out = jax.block_until_ready(positional_encoding_forward(x, pe_table))

    # Pure-JAX reference mirroring the PyTorch forward.
    ref = x + pe_table[None, :L, :]
    assert out.shape == (B, L, D)
    np.testing.assert_allclose(np.asarray(out), np.asarray(ref), atol=1e-6, rtol=1e-6)

    print("KERNEL_OK")
</pallas_src>

<mosaic_0001>
module attributes {stable_mosaic.version = 11 : i64} {
  func.func @posenc_kernel(%arg0: i32, %arg1: memref<2x16x128xf32, #tpu.memory_space<vmem>>, %arg2: memref<16x128xf32, #tpu.memory_space<vmem>>, %arg3: memref<2x16x128xf32, #tpu.memory_space<vmem>>) attributes {dimension_semantics = [#tpu.dimension_semantics<parallel>], iteration_bounds = array<i64: 2>, scalar_prefetch = 0 : i64, scratch_operands = 0 : i64, tpu.core_type = #tpu.core_type<tc>, window_params = [{transform_indices = @transform_0, window_bounds = array<i64: 2, 16, 128>}, {transform_indices = @transform_1, window_bounds = array<i64: 16, 128>}, {transform_indices = @transform_2, window_bounds = array<i64: 2, 16, 128>}]} {
    %c0 = arith.constant 0 : index
    %c0_0 = arith.constant 0 : index
    %c0_1 = arith.constant 0 : index
    %0 = vector.load %arg1[%c0, %c0_0, %c0_1] : memref<2x16x128xf32, #tpu.memory_space<vmem>>, vector<2x16x128xf32>
    %c0_2 = arith.constant 0 : index
    %c0_3 = arith.constant 0 : index
    %1 = vector.load %arg2[%c0_2, %c0_3] : memref<16x128xf32, #tpu.memory_space<vmem>>, vector<16x128xf32>
    %2 = vector.shape_cast %1 : vector<16x128xf32> to vector<1x16x128xf32>
    %3 = vector.broadcast %2 : vector<1x16x128xf32> to vector<2x16x128xf32>
    %4 = arith.addf %0, %3 : vector<2x16x128xf32>
    %c0_4 = arith.constant 0 : index
    %c0_5 = arith.constant 0 : index
    %c0_6 = arith.constant 0 : index
    %5 = vector.load %arg3[%c0_4, %c0_5, %c0_6] : memref<2x16x128xf32, #tpu.memory_space<vmem>>, vector<2x16x128xf32>
    tpu.vector_store %arg3[%c0_4, %c0_5, %c0_6], %4 {strides = array<i32>} : memref<2x16x128xf32, #tpu.memory_space<vmem>>, vector<2x16x128xf32>,
    return
  }
  func.func @transform_0(%arg0: i32) -> (i32, i32, i32) {
    %c0_i32 = arith.constant 0 : i32
    %c0_i32_0 = arith.constant 0 : i32
    %c0_i32_1 = arith.constant 0 : i32
    return %arg0, %c0_i32, %c0_i32_0 : i32, i32, i32
  }
  func.func @transform_1(%arg0: i32) -> (i32, i32) {
    %c0_i32 = arith.constant 0 : i32
    %c0_i32_0 = arith.constant 0 : i32
    %c0_i32_1 = arith.constant 0 : i32
    return %c0_i32, %c0_i32_0 : i32, i32
  }
  func.func @transform_2(%arg0: i32) -> (i32, i32, i32) {
    %c0_i32 = arith.constant 0 : i32
    %c0_i32_0 = arith.constant 0 : i32
    %c0_i32_1 = arith.constant 0 : i32
    return %arg0, %c0_i32, %c0_i32_0 : i32, i32, i32
  }
}

</mosaic_0001>

<llo_original>
// kernel: tpu_custom_call.1
$region0: #{tpu_custom_call.1}
  #allocation0 [shape = 'u32[]', space=smem, size = 0x4, offset = 0x4, fixed_abs, tag = 'smem constant byte address 0x4 - core index']
  #allocation1 [shape = 'u32[144,128]{1,0:T(1,128)}', space=vmem, size = 0x12000, scoped, tag = 'internal scratch']
  %s0 = inlined_call_operand.hbm [shape: f32[4,16,128], index: 0, kind: input, shape index: {}, may-alias: {0,2}]
  %s1 = inlined_call_operand.vmem [shape: f32[64,128], index: 1, kind: input, shape index: {}]
  %s2 = inlined_call_operand.hbm [shape: f32[4,16,128], index: 2, kind: output, shape index: {}, may-alias: {0,2}]
  %s3 = sld [smem:[#allocation0]]
  $region45: #{tpu_custom_call.1} parent=0
    _
  %s5 = ssub.s32 1, %s3
  %s6 = scalar_select 0, %s5, %s3
  $region1: #{tpu_custom_call.1} parent=0
    #allocation2 [shape = 'u8[32768]{0}', space=vmem, size = 0x8000, scoped, tag = 'input window, operand 0']
    #allocation3 [shape = 's32[2]{0}', space=sflag, size = 0x8, scoped, tag = 'scoped memory for tpu_custom_call.1']
    #allocation4 [shape = 's32[2]{0}', space=sflag, size = 0x8, scoped, tag = 'scoped memory for tpu_custom_call.1']
    #allocation5 [shape = 'u8[32768]{0}', space=vmem, size = 0x8000, scoped, tag = 'output window, operand 0']
    %7 = vsyncpa [#allocation3], 0
    %s8 = scalar_lea.sflag [#allocation3], 1
    %9 = vsyncpa %s8, 0
    %10 = vsyncpa [#allocation4], 0
    %s11 = scalar_lea.sflag [#allocation4], 1
    %12 = vsyncpa %s11, 0
    loop: start=0, step=1, limit=4
    $region2: #{tpu_custom_call.1} parent=1 // loop_pre_header
      _
    $region3: #{tpu_custom_call.1} parent=1 // loop_header
      %s14 = sphi 0, %s18
      %p15 = scmp.ge.s32.totalorder %s14, 4
      %s24 = sphi 0, %s26
      %s27 = sphi 0, %s24
      %s28 = sphi 0, %s27
      %s44 = sphi 0, %s28
      %s48 = sphi 0, %s48
      %s50 = sphi 0, %s48
      %s51 = sphi 0, %s50
      %s65 = sphi 0, %s51
      %s71 = sphi 0, %s73
      %s74 = sphi 0, %s71
      %s75 = sphi 0, %s74
      %s91 = sphi 0, %s75
    $region4: #{tpu_custom_call.1} parent=1 // loop_header_branch
      %17 = sbr.rel (%p15) target = $region8
    $region5: #{tpu_custom_call.1} parent=1 // loop_body
      %s19 = ssub.s32 %s14, 1
      %s20 = ssub.s32 %s14, 2
      %s21 = sadd.s32 %s14, 1
      %s22 = ssub.s32 %s14, %s21
      %p23 = scmp.eq.s32.totalorder %s22, 0
      %s25 = sadd.s32 %s24, 1
      %s26 = scalar_select %p23, %s24, %s25
      %p29 = pneg %p23
      %p30 = scmp.eq.s32.totalorder %s14, 1
      %p31 = por %p29, %p30
      %p32 = scmp.ne.s32.totalorder %s24, %s27
      %p33 = scmp.eq.s32.totalorder %s14, 0
      %p34 = por %p32, %p33
      %p35 = scmp.ne.s32.totalorder %s24, %s27
      %p36 = scmp.eq.s32.totalorder %s19, 1
      %p37 = por %p35, %p36
      %p38 = scmp.ne.s32.totalorder %s27, %s28
      %p39 = scmp.eq.s32.totalorder %s19, 0
      %p40 = por %p38, %p39
      %p41 = scmp.ne.s32.totalorder %s27, %s28
      %p42 = scmp.eq.s32.totalorder %s20, 1
      %p43 = por %p41, %p42
      %p45 = scmp.ne.s32.totalorder %s28, %s44
      %p46 = scmp.eq.s32.totalorder %s20, 0
      %p47 = por %p45, %p46
      %s49 = sadd.s32 %s48, 1
      %p52 = scmp.eq.s32.totalorder %s14, 1
      %p53 = scmp.ne.s32.totalorder %s48, %s50
      %p54 = scmp.eq.s32.totalorder %s14, 0
      %p55 = por %p53, %p54
      %p56 = scmp.ne.s32.totalorder %s48, %s50
      %p57 = scmp.eq.s32.totalorder %s19, 1
      %p58 = por %p56, %p57
      %p59 = scmp.ne.s32.totalorder %s50, %s51
      %p60 = scmp.eq.s32.totalorder %s19, 0
      %p61 = por %p59, %p60
      %p62 = scmp.ne.s32.totalorder %s50, %s51
      %p63 = scmp.eq.s32.totalorder %s20, 1
      %p64 = por %p62, %p63
      %p66 = scmp.ne.s32.totalorder %s51, %s65
      %p67 = scmp.eq.s32.totalorder %s20, 0
      %p68 = por %p66, %p67
      %s69 = ssub.s32 %s14, %s21
      %p70 = scmp.eq.s32.totalorder %s69, 0
      %s72 = sadd.s32 %s71, 1
      %s73 = scalar_select %p70, %s71, %s72
      %p76 = pneg %p70
      %p77 = scmp.eq.s32.totalorder %s14, 1
      %p78 = por %p76, %p77
      %p79 = scmp.ne.s32.totalorder %s71, %s74
      %p80 = scmp.eq.s32.totalorder %s14, 0
      %p81 = por %p79, %p80
      %p82 = scmp.ne.s32.totalorder %s71, %s74
      %p83 = scmp.eq.s32.totalorder %s19, 1
      %p84 = por %p82, %p83
      %p85 = scmp.ne.s32.totalorder %s74, %s75
      %p86 = scmp.eq.s32.totalorder %s19, 0
      %p87 = por %p85, %p86
      %p88 = scmp.ne.s32.totalorder %s74, %s75
      %p89 = scmp.eq.s32.totalorder %s20, 1
      %p90 = por %p88, %p89
      %p92 = scmp.ne.s32.totalorder %s75, %s91
      %p93 = scmp.eq.s32.totalorder %s20, 0
      %p94 = por %p92, %p93
      %p95 = scmp.le.s32.totalorder 1, %s14
      %p96 = scmp.lt.s32.totalorder %s14, 3
      %p97 = pnand %p95, %p96
      %p98 = pneg %p97
      // Predicated region
      $region9: #{tpu_custom_call.1} parent=5 // pred_check
        _
      $region10: #{tpu_custom_call.1} parent=5 // pred_check_branch
        %100 = sbr.rel (%p97) target = $region12
      $region11: #{tpu_custom_call.1} parent=5 // pred_region
        %s101 = ssub.s32 %s14, 1
        // Predicated region
        $region13: #{tpu_custom_call.1} parent=11 // pred_check
          %p102 = pneg %p61
        $region14: #{tpu_custom_call.1} parent=11 // pred_check_branch
          %104 = sbr.rel (%p102) target = $region16
        $region15: #{tpu_custom_call.1} parent=11 // pred_region
          _
        $region16: #{tpu_custom_call.1} parent=11 // pred_fallthru
          _
      $region12: #{tpu_custom_call.1} parent=5 // pred_fallthru
        _
      %p105 = scmp.lt.s32.totalorder %s14, 2
      // Predicated region
      $region17: #{tpu_custom_call.1} parent=5 // pred_check
        %p106 = pneg %p105
      $region18: #{tpu_custom_call.1} parent=5 // pred_check_branch
        %108 = sbr.rel (%p106) target = $region20
      $region19: #{tpu_custom_call.1} parent=5 // pred_region
        // Predicated region
        $region21: #{tpu_custom_call.1} parent=19 // pred_check
          %p109 = pneg %p34
        $region22: #{tpu_custom_call.1} parent=19 // pred_check_branch
          %111 = sbr.rel (%p109) target = $region24
        $region23: #{tpu_custom_call.1} parent=19 // pred_region
          %s112 = sand.u32 %s24, 1
          %s113 = scalar_lea.sflag [#allocation3], %s112
          %s114 = sand.u32 %s24, 1
          %s115 = smul.addr %s114, 32
          %s116 = scalar_lea.vmem [#allocation2], %s115
          %s117 = smul.u32 2, %s14
          %s119 = ssub.s32 512, 512
          %120 = vsyncadd %s113, %s119
          %s121 = smul.addr %s117, 2
          %s122 = smul.addr %s121, 128
          %s123 = scalar_lea.hbm %s0, %s122
          %s124 = sshll.u32 %s116, 4
          %s125 = int_to_ptr.vmem [resolvable:$true] %s124
          %130 = dma.hbm_to_vmem [thread:$0]  %s123, 512, %s125, %s113, 128, 128, 8
        $region24: #{tpu_custom_call.1} parent=19 // pred_fallthru
          _
      $region20: #{tpu_custom_call.1} parent=5 // pred_fallthru
        _
      %p131 = scmp.le.s32.totalorder 1, %s14
      %p132 = scmp.lt.s32.totalorder %s14, 3
      %p133 = pnand %p131, %p132
      %p134 = pneg %p133
      // Predicated region
      $region25: #{tpu_custom_call.1} parent=5 // pred_check
        _
      $region26: #{tpu_custom_call.1} parent=5 // pred_check_branch
        %136 = sbr.rel (%p133) target = $region28
      $region27: #{tpu_custom_call.1} parent=5 // pred_region
        %s137 = ssub.s32 %s14, 1
        %s138 = sand.u32 %s27, 1
        %s139 = scalar_lea.sflag [#allocation3], %s138
        %s140 = sand.u32 %s27, 1
        %s141 = smul.addr %s140, 32
        %s142 = scalar_lea.vmem [#allocation2], %s141
        // Predicated region
        $region29: #{tpu_custom_call.1} parent=27 // pred_check
          %p143 = pneg %p40
        $region30: #{tpu_custom_call.1} parent=27 // pred_check_branch
          %145 = sbr.rel (%p143) target = $region32
        $region31: #{tpu_custom_call.1} parent=27 // pred_region
          %146 = dma.done %s139, 512
        $region32: #{tpu_custom_call.1} parent=27 // pred_fallthru
          _
        %s147 = sand.u32 %s27, 1
        %s148 = scalar_lea.sflag [#allocation3], %s147
        %s149 = sand.u32 %s27, 1
        %s150 = smul.addr %s149, 32
        %s151 = scalar_lea.vmem [#allocation2], %s150
        %p152 = pneg %p40
        %p153 = pneg %p37
        %p154 = pneg %p61
        %p155 = pneg %p58
        %p156 = pneg %p87
        %p157 = pneg %p84
        %s158 = sand.u32 %s74, 1
        %s159 = scalar_lea.sflag [#allocation4], %s158
        %s160 = sand.u32 %s74, 1
        %s161 = smul.addr %s160, 32
        %s162 = scalar_lea.vmem [#allocation5], %s161
        %s163 = smul.u32 2, %s19
        %s164 = smul.u32 2, %s19
        %v165 = vld [vmem:[%s142] sm:$0xff]
        %v166 = vld [vmem:[%s142 + $0x8] sm:$0xff]
        %v167 = vld [vmem:[%s142 + $0x10] sm:$0xff]
        %v168 = vld [vmem:[%s142 + $0x18] sm:$0xff]
        %v169 = vld [vmem:[%s1] sm:$0xff]
        %v170 = vld [vmem:[%s1 + $0x8] sm:$0xff]
        %v171 = vadd.f32 %v165, %v169
        %v172 = vadd.f32 %v166, %v170
        %v173 = vadd.f32 %v167, %v169
        %v174 = vadd.f32 %v168, %v170
        %175 = vst [vmem:[%s162] sm:$0xff] %v171
        %176 = vst [vmem:[%s162 + $0x8] sm:$0xff] %v172
        %177 = vst [vmem:[%s162 + $0x10] sm:$0xff] %v173
        %178 = vst [vmem:[%s162 + $0x18] sm:$0xff] %v174
        %s179 = sand.u32 %s74, 1
        %s180 = scalar_lea.sflag [#allocation4], %s179
        %s181 = sand.u32 %s74, 1
        %s182 = smul.addr %s181, 32
        %s183 = scalar_lea.vmem [#allocation5], %s182
        // Predicated region
        $region33: #{tpu_custom_call.1} parent=27 // pred_check
          %p184 = pneg %p84
        $region34: #{tpu_custom_call.1} parent=27 // pred_check_branch
          %186 = sbr.rel (%p184) target = $region36
        $region35: #{tpu_custom_call.1} parent=27 // pred_region
          %s187 = smul.u32 2, %s19
          %s189 = ssub.s32 512, 512
          %190 = vsyncadd %s180, %s189
          %s191 = smul.addr %s187, 2
          %s192 = smul.addr %s191, 128
          %s193 = scalar_lea.hbm %s2, %s192
          %s194 = sshll.u32 %s183, 4
          %s195 = int_to_ptr.vmem [resolvable:$true] %s194
          %200 = dma.vmem_to_hbm [thread:$0]  %s195, 512, %s193, %s180, 128, 128, 8
        $region36: #{tpu_custom_call.1} parent=27 // pred_fallthru
          _
      $region28: #{tpu_custom_call.1} parent=5 // pred_fallthru
        _
      %p201 = scmp.le.s32.totalorder 2, %s14
      // Predicated region
      $region37: #{tpu_custom_call.1} parent=5 // pred_check
        %p202 = pneg %p201
      $region38: #{tpu_custom_call.1} parent=5 // pred_check_branch
        %204 = sbr.rel (%p202) target = $region40
      $region39: #{tpu_custom_call.1} parent=5 // pred_region
        %s205 = ssub.s32 %s14, 2
        // Predicated region
        $region41: #{tpu_custom_call.1} parent=39 // pred_check
          %p206 = pneg %p90
        $region42: #{tpu_custom_call.1} parent=39 // pred_check_branch
          %208 = sbr.rel (%p206) target = $region44
        $region43: #{tpu_custom_call.1} parent=39 // pred_region
          %s209 = sand.u32 %s75, 1
          %s210 = scalar_lea.sflag [#allocation4], %s209
          %s211 = sand.u32 %s75, 1
          %s212 = smul.addr %s211, 32
          %s213 = scalar_lea.vmem [#allocation5], %s212
          %214 = dma.done %s210, 512
        $region44: #{tpu_custom_call.1} parent=39 // pred_fallthru
          _
      $region40: #{tpu_custom_call.1} parent=5 // pred_fallthru
        _
    $region6: #{tpu_custom_call.1} parent=1 // loop_footer
      %s18 = sadd.s32 1, %s14
    $region7: #{tpu_custom_call.1} parent=1 // loop_footer_branch
      %13 = sbr.rel target = $region3
    $region8: #{tpu_custom_call.1} parent=1 // loop_exit
      _
    %215 = vsyncpa [#allocation3], 1
    %s216 = scalar_lea.sflag [#allocation3], 1
    %217 = vsyncpa %s216, 1
    %218 = vsyncpa [#allocation4], 1
    %s219 = scalar_lea.sflag [#allocation4], 1
    %220 = vsyncpa %s219, 1

</llo_original>
